<compile_context>
chip_gen: v5e
topology: v5e:2x2
jax: 0.10.0
libtpu: 0.0.40
codegen_flags: <defaults>
</compile_context>

<pallas_src>
import math
from functools import partial

import jax
import jax.numpy as jnp
from jax import lax
from jax.experimental import pallas as pl
from jax.experimental.pallas import tpu as pltpu

_EPS = 1e-5        # F.instance_norm default eps
_NEG_BIG = -1e30   # "minus infinity" bias for padded key columns


def _self_attention_kernel(x_ref, w_ref, b_ref, o_ref,
                           k_ref, q_ref, v_ref, *,
                           att_features, l_real, tq, n_q_per_split, masked,
                           compute_dtype, exp_dtype, approx_recip):
    F_ = att_features
    L_pad = k_ref.shape[-1]
    split = pl.program_id(0)
    q_local = pl.program_id(2)
    has_pad = (l_real != L_pad)          # static (Python-level)

    # ---- once per (core-split, batch): stacked QKV projection + inst-norm ----
    @pl.when(q_local == 0)
    def _():
        x = x_ref[0]                                               # (C, L_pad)
        # Conv1d(k=1) for K, Q, V fused into ONE (3F,C)x(C,L) MXU matmul.
        proj = jnp.dot(w_ref[...], x,
                       preferred_element_type=jnp.float32) + b_ref[...]
        key = proj[0:F_]
        query = proj[F_:2 * F_]
        value = proj[2 * F_:3 * F_]

        if has_pad:
            col = lax.broadcasted_iota(jnp.int32, (1, L_pad), 1)
            valid = (col < l_real).astype(jnp.float32)             # (1, L_pad)
            bias_row = jnp.where(col < l_real, 0.0, _NEG_BIG).astype(jnp.float32)
        else:
            valid = None
            bias_row = jnp.zeros((1, L_pad), jnp.float32)
        inv_n = jnp.float32(1.0 / l_real)

        def inorm(t):
            # F.instance_norm (no affine), biased variance, stats over the
            # REAL spatial length only (padding-aware).
            if has_pad:
                mu = jnp.sum(t * valid, axis=-1, keepdims=True) * inv_n
                d = (t - mu) * valid
                var = jnp.sum(d * d, axis=-1, keepdims=True) * inv_n
            else:
                mu = jnp.mean(t, axis=-1, keepdims=True)
                var = jnp.mean((t - mu) ** 2, axis=-1, keepdims=True)
            return (t - mu) * lax.rsqrt(var + jnp.float32(_EPS))

        key_n = inorm(key)
        # Fold the 1/sqrt(F) softmax scale into Q: F*L muls instead of L*L.
        query_n = inorm(query) * jnp.float32(1.0 / math.sqrt(F_))
        if has_pad:
            value = value * valid   # padded query positions contribute nothing

        # K' = [K ; pad_bias],  Q' = [Q ; ones]  ->  K'^T Q' = att + pad bias,
        # so the key-padding mask costs zero per-tile VALU work.
        k_ref[0:F_, :] = key_n.astype(compute_dtype)
        k_ref[F_:F_ + 1, :] = bias_row.astype(compute_dtype)
        q_ref[0:F_, :] = query_n.astype(compute_dtype)
        q_ref[F_:F_ + 1, :] = jnp.ones((1, L_pad), compute_dtype)
        v_ref[...] = value.astype(compute_dtype)

    # ---- per query tile: attention in transposed (key, query) layout ----
    q0 = pl.multiple_of((split * n_q_per_split + q_local) * tq, tq)
    q_tile = q_ref[:, pl.ds(q0, tq)]                               # (F+1, tq)

    # att[l, i] = sum_f K'[f, l] * Q'[f, i]   (keys on sublanes, queries on lanes)
    att = lax.dot_general(k_ref[...], q_tile, (((0,), (0,)), ((), ())),
                          preferred_element_type=jnp.float32)      # (L_pad, tq)

    if masked:
        # torch.triu semantics: keep key index >= query index, ZERO elsewhere.
        l_idx = lax.broadcasted_iota(jnp.int32, (L_pad, tq), 0)
        qg = q0 + lax.broadcasted_iota(jnp.int32, (L_pad, tq), 1)
        att = jnp.where(l_idx >= qg, att, jnp.float32(0.0))

    # Numerically stable softmax over the key axis (axis 0 here).  Stats land
    # as (1, tq) lane vectors -> denominator folds into V with F*tq muls.
    att = att - jnp.max(att, axis=0, keepdims=True)
    e = jnp.exp(att.astype(exp_dtype))                             # (L_pad, tq)
    s = jnp.sum(e, axis=0, keepdims=True, dtype=jnp.float32)       # (1, tq)
    inv_s = pl.reciprocal(s, approx=approx_recip)                  # exact for f32

    v_tile = v_ref[:, pl.ds(q0, tq)]                               # (F, tq)
    v_scaled = v_tile * inv_s.astype(compute_dtype)                # (F, tq)
    # contrib[f, l] = sum_i v_scaled[f, i] * e[l, i]
    contrib = lax.dot_general(v_scaled, e.astype(compute_dtype),
                              (((1,), (1,)), ((), ())),
                              preferred_element_type=jnp.float32)  # (F, L_pad)

    @pl.when(q_local == 0)
    def _():
        o_ref[0, 0] = contrib          # first tile: direct write (no zero-init)

    @pl.when(q_local > 0)
    def _():
        o_ref[0, 0] += contrib


def self_attention_pallas(x, wk, bk, wq, bq, wv, bv, *, masked=False,
                          compute_dtype=jnp.bfloat16, tq_max=512,
                          core_split=None):
    """x: (B, C, L) float32. Weights (F, C), biases (F,). Returns (B, F, L) f32."""
    B, C, L = x.shape
    F_ = wk.shape[0]
    is_bf16 = jnp.dtype(compute_dtype) == jnp.dtype(jnp.bfloat16)

    # ---- best-effort TPU-generation detection (policy only, never correctness) ----
    try:
        kind = jax.devices()[0].device_kind.lower()
    except Exception:
        kind = ""
    is_v7 = "v7" in kind
    is_v6 = "v6" in kind
    is_v5 = "v5" in kind

    # ---- pick tq FIRST, then pad L to a multiple of it (lane-dense output) ----
    L_round = max(128, ((L + 127) // 128) * 128)
    tq = max(128, (min(max(tq_max, 128), L_round) // 128) * 128)
    if is_v7:                       # 64 MiB physical VMEM: keep per-tile temps small
        if L_round >= 8192:
            tq = min(tq, 128)
        elif L_round >= 4096:
            tq = min(tq, 256)
    else:
        if L_round >= 16384:
            tq = min(tq, 128)
        elif L_round >= 8192:
            tq = min(tq, 256)

    n_q = pl.cdiv(L, tq)
    if core_split is None:
        n_split = 2 if (is_v7 and B == 1 and n_q >= 2) else 1
    else:
        n_split = max(1, int(core_split))
    n_q = pl.cdiv(n_q, n_split) * n_split
    n_q_per_split = n_q // n_split
    L_pad = n_q * tq

    # ---- host-side input prep: bf16 feed halves the dominant x DMA ----
    feed_dtype = jnp.bfloat16 if is_bf16 else jnp.float32
    xp = x.astype(feed_dtype)
    if L_pad != L:
        xp = jnp.pad(xp, ((0, 0), (0, 0), (0, L_pad - L)))
    w_all = jnp.concatenate([wk, wq, wv], axis=0).astype(feed_dtype)          # (3F, C)
    b_all = jnp.concatenate([bk, bq, bv], axis=0).reshape(3 * F_, 1).astype(jnp.float32)

    # bf16 exp only where the EUP has a bf16 path (v6e / v7x); f32 elsewhere.
    exp_dtype = jnp.bfloat16 if (is_bf16 and (is_v6 or is_v7)) else jnp.float32
    approx_recip = is_bf16   # keep the reciprocal exact on the f32 path

    kernel = partial(_self_attention_kernel,
                     att_features=F_, l_real=L, tq=tq,
                     n_q_per_split=n_q_per_split, masked=masked,
                     compute_dtype=compute_dtype, exp_dtype=exp_dtype,
                     approx_recip=approx_recip)

    # ---- generation-aware scoped-VMEM policy ----
    cd_item = jnp.dtype(compute_dtype).itemsize
    xf_item = jnp.dtype(feed_dtype).itemsize
    est = (2 * C * L_pad * xf_item                      # x block (double-buffered)
           + 2 * (3 * F_ * C + 3 * F_) * xf_item        # W / b blocks
           + 2 * F_ * L_pad * 4                          # output block (double-buffered)
           + (2 * (F_ + 1) + F_) * L_pad * cd_item       # K'/Q'/V scratch
           + 3 * tq * L_pad * 4)                         # per-tile att/e temporaries
    if is_v7:
        default_scoped, cap = 32 << 20, 40 << 20
    elif is_v6:
        default_scoped, cap = 32 << 20, 96 << 20
    elif is_v5:
        default_scoped, cap = 16 << 20, 96 << 20
    else:
        default_scoped, cap = 16 << 20, 64 << 20
    need = int(est * 1.4)
    vmem_limit = None if need <= default_scoped else int(min(max(need, default_scoped), cap))

    out = pl.pallas_call(
        kernel,
        out_shape=jax.ShapeDtypeStruct((n_split, B, F_, L_pad), jnp.float32),
        grid_spec=pltpu.PrefetchScalarGridSpec(
            num_scalar_prefetch=0,
            grid=(n_split, B, n_q_per_split),
            in_specs=[
                pl.BlockSpec((1, C, L_pad), lambda c, b, q: (b, 0, 0)),    # x
                pl.BlockSpec((3 * F_, C), lambda c, b, q: (0, 0)),         # stacked W
                pl.BlockSpec((3 * F_, 1), lambda c, b, q: (0, 0)),         # stacked b
            ],
            out_specs=pl.BlockSpec((1, 1, F_, L_pad), lambda c, b, q: (c, b, 0, 0)),
            scratch_shapes=[
                pltpu.VMEM((F_ + 1, L_pad), compute_dtype),   # K' (+ padding-bias row)
                pltpu.VMEM((F_ + 1, L_pad), compute_dtype),   # Q' (+ ones row)
                pltpu.VMEM((F_, L_pad), compute_dtype),       # V
            ],
        ),
        compiler_params=pltpu.CompilerParams(
            dimension_semantics=("parallel", "parallel", "arbitrary"),
            vmem_limit_bytes=vmem_limit),
    )(xp, w_all, b_all)

    out = out.sum(axis=0) if n_split > 1 else out[0]
    return out[:, :, :L]


def _reference(x, wk, bk, wq, bq, wv, bv, masked=False):
    """Pure-JAX reference mirroring the PyTorch forward."""
    def conv1x1(w, b):
        return jnp.einsum("fc,bcl->bfl", w, x) + b[None, :, None]

    def inorm(t):
        mu = jnp.mean(t, axis=-1, keepdims=True)
        var = jnp.mean((t - mu) ** 2, axis=-1, keepdims=True)
        return (t - mu) / jnp.sqrt(var + _EPS)

    key = inorm(conv1x1(wk, bk))
    query = inorm(conv1x1(wq, bq))
    value = conv1x1(wv, bv)
    att = jnp.einsum("bfi,bfj->bij", query, key)
    if masked:
        att = jnp.triu(att)
    att_map = jax.nn.softmax(att / math.sqrt(wk.shape[0]), axis=2)
    return jnp.einsum("bfj,bji->bfi", value, att_map)


if __name__ == "__main__":
    B, C_IN, ATT_F, L = 2, 4, 8, 16

    key0 = jax.random.PRNGKey(0)
    kx, k1, k2, k3, k4, k5, k6 = jax.random.split(key0, 7)

    x = jax.random.normal(kx, (B, C_IN, L), dtype=jnp.float32)

    # Deterministic Conv1d-style init: U(-bound, bound), bound = 1/sqrt(C_in*ks)
    bound = 1.0 / math.sqrt(C_IN * 1)
    wk = jax.random.uniform(k1, (ATT_F, C_IN), minval=-bound, maxval=bound)
    bk = jax.random.uniform(k2, (ATT_F,), minval=-bound, maxval=bound)
    wq = jax.random.uniform(k3, (ATT_F, C_IN), minval=-bound, maxval=bound)
    bq = jax.random.uniform(k4, (ATT_F,), minval=-bound, maxval=bound)
    wv = jax.random.uniform(k5, (ATT_F, C_IN), minval=-bound, maxval=bound)
    bv = jax.random.uniform(k6, (ATT_F,), minval=-bound, maxval=bound)

    ref = _reference(x, wk, bk, wq, bq, wv, bv, masked=False)

    # 1) f32 path, unmasked — tight tolerance.
    out = jax.block_until_ready(self_attention_pallas(
        x, wk, bk, wq, bq, wv, bv, masked=False, compute_dtype=jnp.float32))
    assert out.shape == (B, ATT_F, L)
    assert jnp.allclose(out, ref, atol=1e-4, rtol=1e-4), \
        f"f32 max abs err {jnp.max(jnp.abs(out - ref))}"

    # 2) masked (torch.triu) path, f32.
    out_m = jax.block_until_ready(self_attention_pallas(
        x, wk, bk, wq, bq, wv, bv, masked=True, compute_dtype=jnp.float32))
    ref_m = _reference(x, wk, bk, wq, bq, wv, bv, masked=True)
    assert jnp.allclose(out_m, ref_m, atol=1e-4, rtol=1e-4), \
        f"masked max abs err {jnp.max(jnp.abs(out_m - ref_m))}"

    # 3) end-to-end bf16 path (bf16 x/W feed, bf16 attention, approx recip,
    #    possibly bf16 exp) with f32 accumulation — bf16-appropriate tolerance.
    out_bf = jax.block_until_ready(self_attention_pallas(
        x, wk, bk, wq, bq, wv, bv, masked=False, compute_dtype=jnp.bfloat16))
    assert jnp.allclose(out_bf, ref, atol=1e-1, rtol=1e-1), \
        f"bf16 max abs err {jnp.max(jnp.abs(out_bf - ref))}"

    # 4) padded-L + multi-query-tile accumulation (L=200 -> L_pad=256, 2 tiles),
    #    both unmasked and masked, f32.
    L2 = 200
    x2 = jax.random.normal(jax.random.PRNGKey(1), (B, C_IN, L2), dtype=jnp.float32)
    out2 = jax.block_until_ready(self_attention_pallas(
        x2, wk, bk, wq, bq, wv, bv, masked=False,
        compute_dtype=jnp.float32, tq_max=128))
    ref2 = _reference(x2, wk, bk, wq, bq, wv, bv, masked=False)
    assert jnp.allclose(out2, ref2, atol=1e-4, rtol=1e-4), \
        f"tiled max abs err {jnp.max(jnp.abs(out2 - ref2))}"

    out2m = jax.block_until_ready(self_attention_pallas(
        x2, wk, bk, wq, bq, wv, bv, masked=True,
        compute_dtype=jnp.float32, tq_max=128))
    ref2m = _reference(x2, wk, bk, wq, bq, wv, bv, masked=True)
    assert jnp.allclose(out2m, ref2m, atol=1e-4, rtol=1e-4), \
        f"tiled masked max abs err {jnp.max(jnp.abs(out2m - ref2m))}"

    # 5) forced core-split path (leading parallel axis, partial-sum outputs),
    #    B=1, L=300 -> 4 query tiles split 2x2, f32.
    x3 = jax.random.normal(jax.random.PRNGKey(2), (1, C_IN, 300), dtype=jnp.float32)
    out3 = jax.block_until_ready(self_attention_pallas(
        x3, wk, bk, wq, bq, wv, bv, masked=False,
        compute_dtype=jnp.float32, tq_max=128, core_split=2))
    ref3 = _reference(x3, wk, bk, wq, bq, wv, bv, masked=False)
    assert jnp.allclose(out3, ref3, atol=1e-4, rtol=1e-4), \
        f"core-split max abs err {jnp.max(jnp.abs(out3 - ref3))}"

    print("KERNEL_OK")
</pallas_src>

<mosaic_0001>
module attributes {stable_mosaic.version = 11 : i64} {
  func.func @_self_attention_kernel(%arg0: i32, %arg1: i32, %arg2: i32, %arg3: memref<1x4x128xf32, #tpu.memory_space<vmem>>, %arg4: memref<24x4xf32, #tpu.memory_space<vmem>>, %arg5: memref<24x1xf32, #tpu.memory_space<vmem>>, %arg6: memref<1x1x8x128xf32, #tpu.memory_space<vmem>>, %arg7: memref<9x128xf32, #tpu.memory_space<vmem>>, %arg8: memref<9x128xf32, #tpu.memory_space<vmem>>, %arg9: memref<8x128xf32, #tpu.memory_space<vmem>>) attributes {dimension_semantics = [#tpu.dimension_semantics<parallel>, #tpu.dimension_semantics<parallel>, #tpu.dimension_semantics<arbitrary>], iteration_bounds = array<i64: 1, 2, 1>, scalar_prefetch = 0 : i64, scratch_operands = 3 : i64, tpu.core_type = #tpu.core_type<tc>, window_params = [{transform_indices = @transform_0, window_bounds = array<i64: 1, 4, 128>}, {pipeline_mode = #tpu.pipeline_mode<synchronous>, transform_indices = @transform_1, window_bounds = array<i64: 24, 4>}, {pipeline_mode = #tpu.pipeline_mode<synchronous>, transform_indices = @transform_2, window_bounds = array<i64: 24, 1>}, {transform_indices = @transform_3, window_bounds = array<i64: 1, 1, 8, 128>}]} {
    %c0_i32 = arith.constant 0 : i32
    %0 = arith.cmpi eq, %arg2, %c0_i32 : i32
    %1 = arith.extui %0 : i1 to i32
    %c0_i32_0 = arith.constant 0 : i32
    %2 = arith.cmpi ne, %1, %c0_i32_0 : i32
    scf.if %2 {
      %c0_11 = arith.constant 0 : index
      %c0_12 = arith.constant 0 : index
      %c0_13 = arith.constant 0 : index
      %30 = vector.load %arg3[%c0_11, %c0_12, %c0_13] : memref<1x4x128xf32, #tpu.memory_space<vmem>>, vector<1x4x128xf32>
      %31 = vector.shape_cast %30 : vector<1x4x128xf32> to vector<4x128xf32>
      %c0_14 = arith.constant 0 : index
      %c0_15 = arith.constant 0 : index
      %32 = vector.load %arg4[%c0_14, %c0_15] : memref<24x4xf32, #tpu.memory_space<vmem>>, vector<24x4xf32>
      %cst_16 = arith.constant dense<0.000000e+00> : vector<24x128xf32>
      %33 = tpu.matmul %32, %31, %cst_16 {dimension_numbers = #tpu.dot_dimension_numbers<[1], [0], [0], [1], [0, 0, 1, 1], [], []>} : vector<24x4xf32>, vector<4x128xf32>, vector<24x128xf32> -> vector<24x128xf32>
      %c0_17 = arith.constant 0 : index
      %c0_18 = arith.constant 0 : index
      %34 = vector.load %arg5[%c0_17, %c0_18] : memref<24x1xf32, #tpu.memory_space<vmem>>, vector<24x1xf32>
      %35 = vector.broadcast %34 : vector<24x1xf32> to vector<24x128xf32>
      %36 = arith.addf %33, %35 : vector<24x128xf32>
      %37 = vector.extract_strided_slice %36 {offsets = [0, 0], sizes = [8, 128], strides = [1, 1]} : vector<24x128xf32> to vector<8x128xf32>
      %38 = vector.extract_strided_slice %36 {offsets = [8, 0], sizes = [8, 128], strides = [1, 1]} : vector<24x128xf32> to vector<8x128xf32>
      %39 = vector.extract_strided_slice %36 {offsets = [16, 0], sizes = [8, 128], strides = [1, 1]} : vector<24x128xf32> to vector<8x128xf32>
      %40 = tpu.iota {dimensions = array<i32: 1>} : vector<1x128xi32>
      %c16_i32 = arith.constant 16 : i32
      %41 = vector.broadcast %c16_i32 : i32 to vector<1x128xi32>
      %42 = arith.cmpi slt, %40, %41 : vector<1x128xi32>
      %43 = arith.extui %42 : vector<1x128xi1> to vector<1x128xi32>
      %44 = arith.sitofp %43 : vector<1x128xi32> to vector<1x128xf32>
      %c16_i32_19 = arith.constant 16 : i32
      %45 = vector.broadcast %c16_i32_19 : i32 to vector<1x128xi32>
      %46 = arith.cmpi slt, %40, %45 : vector<1x128xi32>
      %cst_20 = arith.constant 0.000000e+00 : f32
      %cst_21 = arith.constant -1.000000e+30 : f32
      %47 = vector.broadcast %cst_20 : f32 to vector<1x128xf32>
      %48 = vector.broadcast %cst_21 : f32 to vector<1x128xf32>
      %49 = arith.select %46, %47, %48 : vector<1x128xi1>, vector<1x128xf32>
      %50 = vector.broadcast %44 : vector<1x128xf32> to vector<8x128xf32>
      %51 = arith.mulf %37, %50 : vector<8x128xf32>
      %cst_22 = arith.constant dense<0.000000e+00> : vector<8xf32>
      %52 = vector.multi_reduction <add>, %51, %cst_22 [1] : vector<8x128xf32> to vector<8xf32>
      %53 = vector.shape_cast %52 : vector<8xf32> to vector<8x1xf32>
      %cst_23 = arith.constant 6.250000e-02 : f32
      %54 = vector.broadcast %cst_23 : f32 to vector<8x1xf32>
      %55 = arith.mulf %53, %54 : vector<8x1xf32>
      %56 = vector.broadcast %55 : vector<8x1xf32> to vector<8x128xf32>
      %57 = arith.subf %37, %56 : vector<8x128xf32>
      %58 = vector.broadcast %44 : vector<1x128xf32> to vector<8x128xf32>
      %59 = arith.mulf %57, %58 : vector<8x128xf32>
      %60 = arith.mulf %59, %59 : vector<8x128xf32>
      %cst_24 = arith.constant dense<0.000000e+00> : vector<8xf32>
      %61 = vector.multi_reduction <add>, %60, %cst_24 [1] : vector<8x128xf32> to vector<8xf32>
      %62 = vector.shape_cast %61 : vector<8xf32> to vector<8x1xf32>
      %cst_25 = arith.constant 6.250000e-02 : f32
      %63 = vector.broadcast %cst_25 : f32 to vector<8x1xf32>
      %64 = arith.mulf %62, %63 : vector<8x1xf32>
      %65 = vector.broadcast %55 : vector<8x1xf32> to vector<8x128xf32>
      %66 = arith.subf %37, %65 : vector<8x128xf32>
      %cst_26 = arith.constant 9.99999974E-6 : f32
      %67 = vector.broadcast %cst_26 : f32 to vector<8x1xf32>
      %68 = arith.addf %64, %67 : vector<8x1xf32>
      %69 = math.rsqrt %68 : vector<8x1xf32>
      %70 = vector.broadcast %69 : vector<8x1xf32> to vector<8x128xf32>
      %71 = arith.mulf %66, %70 : vector<8x128xf32>
      %72 = vector.broadcast %44 : vector<1x128xf32> to vector<8x128xf32>
      %73 = arith.mulf %38, %72 : vector<8x128xf32>
      %cst_27 = arith.constant dense<0.000000e+00> : vector<8xf32>
      %74 = vector.multi_reduction <add>, %73, %cst_27 [1] : vector<8x128xf32> to vector<8xf32>
      %75 = vector.shape_cast %74 : vector<8xf32> to vector<8x1xf32>
      %cst_28 = arith.constant 6.250000e-02 : f32
      %76 = vector.broadcast %cst_28 : f32 to vector<8x1xf32>
      %77 = arith.mulf %75, %76 : vector<8x1xf32>
      %78 = vector.broadcast %77 : vector<8x1xf32> to vector<8x128xf32>
      %79 = arith.subf %38, %78 : vector<8x128xf32>
      %80 = vector.broadcast %44 : vector<1x128xf32> to vector<8x128xf32>
      %81 = arith.mulf %79, %80 : vector<8x128xf32>
      %82 = arith.mulf %81, %81 : vector<8x128xf32>
      %cst_29 = arith.constant dense<0.000000e+00> : vector<8xf32>
      %83 = vector.multi_reduction <add>, %82, %cst_29 [1] : vector<8x128xf32> to vector<8xf32>
      %84 = vector.shape_cast %83 : vector<8xf32> to vector<8x1xf32>
      %cst_30 = arith.constant 6.250000e-02 : f32
      %85 = vector.broadcast %cst_30 : f32 to vector<8x1xf32>
      %86 = arith.mulf %84, %85 : vector<8x1xf32>
      %87 = vector.broadcast %77 : vector<8x1xf32> to vector<8x128xf32>
      %88 = arith.subf %38, %87 : vector<8x128xf32>
      %cst_31 = arith.constant 9.99999974E-6 : f32
      %89 = vector.broadcast %cst_31 : f32 to vector<8x1xf32>
      %90 = arith.addf %86, %89 : vector<8x1xf32>
      %91 = math.rsqrt %90 : vector<8x1xf32>
      %92 = vector.broadcast %91 : vector<8x1xf32> to vector<8x128xf32>
      %93 = arith.mulf %88, %92 : vector<8x128xf32>
      %cst_32 = arith.constant 0.353553385 : f32
      %94 = vector.broadcast %cst_32 : f32 to vector<8x128xf32>
      %95 = arith.mulf %93, %94 : vector<8x128xf32>
      %96 = vector.broadcast %44 : vector<1x128xf32> to vector<8x128xf32>
      %97 = arith.mulf %39, %96 : vector<8x128xf32>
      %c0_33 = arith.constant 0 : index
      %c0_34 = arith.constant 0 : index
      %98 = vector.load %arg7[%c0_33, %c0_34] : memref<9x128xf32, #tpu.memory_space<vmem>>, vector<8x128xf32>
      tpu.vector_store %arg7[%c0_33, %c0_34], %71 {strides = array<i32>} : memref<9x128xf32, #tpu.memory_space<vmem>>, vector<8x128xf32>,
      %c8 = arith.constant 8 : index
      %c0_35 = arith.constant 0 : index
      %99 = vector.load %arg7[%c8, %c0_35] : memref<9x128xf32, #tpu.memory_space<vmem>>, vector<1x128xf32>
      tpu.vector_store %arg7[%c8, %c0_35], %49 {strides = array<i32>} : memref<9x128xf32, #tpu.memory_space<vmem>>, vector<1x128xf32>,
      %c0_36 = arith.constant 0 : index
      %c0_37 = arith.constant 0 : index
      %100 = vector.load %arg8[%c0_36, %c0_37] : memref<9x128xf32, #tpu.memory_space<vmem>>, vector<8x128xf32>
      tpu.vector_store %arg8[%c0_36, %c0_37], %95 {strides = array<i32>} : memref<9x128xf32, #tpu.memory_space<vmem>>, vector<8x128xf32>,
      %cst_38 = arith.constant 1.000000e+00 : f32
      %101 = vector.broadcast %cst_38 : f32 to vector<1x128xf32>
      %c8_39 = arith.constant 8 : index
      %c0_40 = arith.constant 0 : index
      %102 = vector.load %arg8[%c8_39, %c0_40] : memref<9x128xf32, #tpu.memory_space<vmem>>, vector<1x128xf32>
      tpu.vector_store %arg8[%c8_39, %c0_40], %101 {strides = array<i32>} : memref<9x128xf32, #tpu.memory_space<vmem>>, vector<1x128xf32>,
      %c0_41 = arith.constant 0 : index
      %c0_42 = arith.constant 0 : index
      %103 = vector.load %arg9[%c0_41, %c0_42] : memref<8x128xf32, #tpu.memory_space<vmem>>, vector<8x128xf32>
      tpu.vector_store %arg9[%c0_41, %c0_42], %97 {strides = array<i32>} : memref<8x128xf32, #tpu.memory_space<vmem>>, vector<8x128xf32>,
    } else {
    }
    %c1_i32 = arith.constant 1 : i32
    %3 = arith.muli %arg0, %c1_i32 : i32
    %4 = arith.addi %3, %arg2 : i32
    %c128_i32 = arith.constant 128 : i32
    %5 = arith.muli %4, %c128_i32 : i32
    %6 = tpu.assume_multiple %5, 128 : i32
    %c0 = arith.constant 0 : index
    %7 = arith.index_cast %6 : i32 to index
    %8 = vector.load %arg8[%c0, %7] : memref<9x128xf32, #tpu.memory_space<vmem>>, vector<9x128xf32>
    %c0_1 = arith.constant 0 : index
    %c0_2 = arith.constant 0 : index
    %9 = vector.load %arg7[%c0_1, %c0_2] : memref<9x128xf32, #tpu.memory_space<vmem>>, vector<9x128xf32>
    %cst = arith.constant dense<0.000000e+00> : vector<128x128xf32>
    %10 = tpu.matmul %9, %8, %cst {dimension_numbers = #tpu.dot_dimension_numbers<[0], [0], [1], [1], [0, 1, 1, 1], [], []>} : vector<9x128xf32>, vector<9x128xf32>, vector<128x128xf32> -> vector<128x128xf32>
    %cst_3 = arith.constant dense<0xFF800000> : vector<128xf32>
    %11 = vector.multi_reduction <maximumf>, %10, %cst_3 [0] : vector<128x128xf32> to vector<128xf32>
    %12 = vector.shape_cast %11 : vector<128xf32> to vector<1x128xf32>
    %13 = vector.broadcast %12 : vector<1x128xf32> to vector<128x128xf32>
    %14 = arith.subf %10, %13 : vector<128x128xf32>
    %15 = math.exp %14 : vector<128x128xf32>
    %cst_4 = arith.constant dense<0.000000e+00> : vector<128xf32>
    %16 = vector.multi_reduction <add>, %15, %cst_4 [0] : vector<128x128xf32> to vector<128xf32>
    %17 = vector.shape_cast %16 : vector<128xf32> to vector<1x128xf32>
    %18 = tpu.reciprocal %17 : vector<1x128xf32> -> vector<1x128xf32>
    %c0_5 = arith.constant 0 : index
    %19 = arith.index_cast %6 : i32 to index
    %20 = vector.load %arg9[%c0_5, %19] : memref<8x128xf32, #tpu.memory_space<vmem>>, vector<8x128xf32>
    %21 = vector.broadcast %18 : vector<1x128xf32> to vector<8x128xf32>
    %22 = arith.mulf %20, %21 : vector<8x128xf32>
    %cst_6 = arith.constant dense<0.000000e+00> : vector<8x128xf32>
    %23 = tpu.matmul %22, %15, %cst_6 {dimension_numbers = #tpu.dot_dimension_numbers<[1], [1], [0], [0], [0, 0, 1, 0], [], []>} : vector<8x128xf32>, vector<128x128xf32>, vector<8x128xf32> -> vector<8x128xf32>
    %c0_i32_7 = arith.constant 0 : i32
    %24 = arith.cmpi eq, %arg2, %c0_i32_7 : i32
    %25 = arith.extui %24 : i1 to i32
    %c0_i32_8 = arith.constant 0 : i32
    %26 = arith.cmpi ne, %25, %c0_i32_8 : i32
    scf.if %26 {
      %c0_11 = arith.constant 0 : index
      %c0_12 = arith.constant 0 : index
      %c0_13 = arith.constant 0 : index
      %c0_14 = arith.constant 0 : index
      %30 = vector.load %arg6[%c0_11, %c0_12, %c0_13, %c0_14] : memref<1x1x8x128xf32, #tpu.memory_space<vmem>>, vector<1x1x8x128xf32>
      %31 = vector.shape_cast %30 : vector<1x1x8x128xf32> to vector<8x128xf32>
      %32 = vector.shape_cast %23 : vector<8x128xf32> to vector<1x1x8x128xf32>
      tpu.vector_store %arg6[%c0_11, %c0_12, %c0_13, %c0_14], %32 {strides = array<i32>} : memref<1x1x8x128xf32, #tpu.memory_space<vmem>>, vector<1x1x8x128xf32>,
    } else {
    }
    %c0_i32_9 = arith.constant 0 : i32
    %27 = arith.cmpi sgt, %arg2, %c0_i32_9 : i32
    %28 = arith.extui %27 : i1 to i32
    %c0_i32_10 = arith.constant 0 : i32
    %29 = arith.cmpi ne, %28, %c0_i32_10 : i32
    scf.if %29 {
      %c0_11 = arith.constant 0 : index
      %c0_12 = arith.constant 0 : index
      %c0_13 = arith.constant 0 : index
      %c0_14 = arith.constant 0 : index
      %30 = vector.load %arg6[%c0_11, %c0_12, %c0_13, %c0_14] : memref<1x1x8x128xf32, #tpu.memory_space<vmem>>, vector<1x1x8x128xf32>
      %31 = vector.shape_cast %30 : vector<1x1x8x128xf32> to vector<8x128xf32>
      %32 = arith.addf %31, %23 : vector<8x128xf32>
      %c0_15 = arith.constant 0 : index
      %c0_16 = arith.constant 0 : index
      %c0_17 = arith.constant 0 : index
      %c0_18 = arith.constant 0 : index
      %33 = vector.load %arg6[%c0_15, %c0_16, %c0_17, %c0_18] : memref<1x1x8x128xf32, #tpu.memory_space<vmem>>, vector<1x1x8x128xf32>
      %34 = vector.shape_cast %33 : vector<1x1x8x128xf32> to vector<8x128xf32>
      %35 = vector.shape_cast %32 : vector<8x128xf32> to vector<1x1x8x128xf32>
      tpu.vector_store %arg6[%c0_15, %c0_16, %c0_17, %c0_18], %35 {strides = array<i32>} : memref<1x1x8x128xf32, #tpu.memory_space<vmem>>, vector<1x1x8x128xf32>,
    } else {
    }
    return
  }
  func.func @transform_0(%arg0: i32, %arg1: i32, %arg2: i32) -> (i32, i32, i32) {
    %c0_i32 = arith.constant 0 : i32
    %c0_i32_0 = arith.constant 0 : i32
    %c0_i32_1 = arith.constant 0 : i32
    return %arg1, %c0_i32, %c0_i32_0 : i32, i32, i32
  }
  func.func @transform_1(%arg0: i32, %arg1: i32, %arg2: i32) -> (i32, i32) {
    %c0_i32 = arith.constant 0 : i32
    %c0_i32_0 = arith.constant 0 : i32
    %c0_i32_1 = arith.constant 0 : i32
    return %c0_i32, %c0_i32_0 : i32, i32
  }
  func.func @transform_2(%arg0: i32, %arg1: i32, %arg2: i32) -> (i32, i32) {
    %c0_i32 = arith.constant 0 : i32
    %c0_i32_0 = arith.constant 0 : i32
    %c0_i32_1 = arith.constant 0 : i32
    return %c0_i32, %c0_i32_0 : i32, i32
  }
  func.func @transform_3(%arg0: i32, %arg1: i32, %arg2: i32) -> (i32, i32, i32, i32) {
    %c0_i32 = arith.constant 0 : i32
    %c0_i32_0 = arith.constant 0 : i32
    %c0_i32_1 = arith.constant 0 : i32
    return %arg0, %arg1, %c0_i32, %c0_i32_0 : i32, i32, i32, i32
  }
}

</mosaic_0001>

<llo_original>
// kernel: tpu_custom_call.1
$region0: #{tpu_custom_call.1}
  #allocation0 [shape = 'u32[]', space=smem, size = 0x4, offset = 0x4, fixed_abs, tag = 'smem constant byte address 0x4 - core index']
  #allocation1 [shape = 'u32[72,128]{1,0:T(1,128)}', space=vmem, size = 0x9000, scoped, tag = 'internal scratch']
  #allocation2 [shape = 'f32[9,128]{1,0:T(8,128)}', space=vmem, size = 0x2000, scoped, tag = 'scratch operand']
  #allocation3 [shape = 'f32[9,128]{1,0:T(8,128)}', space=vmem, size = 0x2000, scoped, tag = 'scratch operand']
  #allocation4 [shape = 'f32[8,128]{1,0:T(8,128)}', space=vmem, size = 0x1000, scoped, tag = 'scratch operand']
  %s0 = inlined_call_operand.vmem [shape: f32[2,4,128], index: 0, kind: input, shape index: {}]
  %s1 = inlined_call_operand.vmem [shape: f32[24,4], index: 1, kind: input, shape index: {}]
  %s2 = inlined_call_operand.vmem [shape: f32[24,1], index: 2, kind: input, shape index: {}]
  %s3 = inlined_call_operand.hbm [shape: f32[1,2,8,128], index: 3, kind: output, shape index: {}]
  %s4 = sld [smem:[#allocation0]]
  $region57: #{tpu_custom_call.1} parent=0
    _
  %s6 = ssub.s32 1, %s4
  %s7 = scalar_select 0, %s6, %s4
  $region1: #{tpu_custom_call.1} parent=0
    #allocation5 [shape = 'u8[8192]{0}', space=vmem, size = 0x2000, scoped, tag = 'output window, operand 0']
    #allocation6 [shape = 's32[2]{0}', space=sflag, size = 0x8, scoped, tag = 'scoped memory for tpu_custom_call.1']
    %8 = vsyncpa [#allocation6], 0
    %s9 = scalar_lea.sflag [#allocation6], 1
    %10 = vsyncpa %s9, 0
    loop: start=0, step=1, limit=4
    $region2: #{tpu_custom_call.1} parent=1 // loop_pre_header
      _
    $region3: #{tpu_custom_call.1} parent=1 // loop_header
      %s12 = sphi 0, %s16
      %p13 = scmp.ge.s32.totalorder %s12, 4
      %s19 = sphi 0, %s38
      %s20 = sphi 0, %s34
      %s21 = sphi 0, %s30
      %s22 = sphi 0, %s19
      %s23 = sphi 0, %s20
      %s24 = sphi 0, %s21
      %s25 = sphi 0, %s22
      %s26 = sphi 0, %s23
      %s27 = sphi 0, %s24
      %s41 = sphi 0, %s43
      %s44 = sphi 0, %s41
      %s45 = sphi 0, %s44
      %s61 = sphi 0, %s45
      %s65 = sphi 0, %s65
      %s67 = sphi 0, %s65
      %s68 = sphi 0, %s67
      %s82 = sphi 0, %s68
      %s86 = sphi 0, %s86
      %s88 = sphi 0, %s86
      %s89 = sphi 0, %s88
      %s103 = sphi 0, %s89
      %s111 = sphi 0, %s113
      %s114 = sphi 0, %s111
      %s115 = sphi 0, %s114
      %s131 = sphi 0, %s115
    $region4: #{tpu_custom_call.1} parent=1 // loop_header_branch
      %15 = sbr.rel (%p13) target = $region8
    $region5: #{tpu_custom_call.1} parent=1 // loop_body
      %s17 = ssub.s32 %s12, 1
      %s18 = ssub.s32 %s12, 2
      %s28 = sadd.s32 1, %s21
      %p29 = scmp.ge.s32.totalorder %s28, 1
      %s30 = scalar_select %p29, 0, %s28
      %s31 = sadd.s32 1, %s20
      %s32 = scalar_select %p29, %s31, %s20
      %p33 = scmp.ge.s32.totalorder %s32, 2
      %s34 = scalar_select %p33, 0, %s32
      %s35 = sadd.s32 1, %s19
      %s36 = scalar_select %p33, %s35, %s19
      %p37 = scmp.ge.s32.totalorder %s36, 1
      %s38 = scalar_select %p37, 0, %s36
      %s39 = ssub.s32 %s20, %s34
      %p40 = scmp.eq.s32.totalorder %s39, 0
      %s42 = sadd.s32 %s41, 1
      %s43 = scalar_select %p40, %s41, %s42
      %p46 = pneg %p40
      %p47 = scmp.eq.s32.totalorder %s12, 1
      %p48 = por %p46, %p47
      %p49 = scmp.ne.s32.totalorder %s41, %s44
      %p50 = scmp.eq.s32.totalorder %s12, 0
      %p51 = por %p49, %p50
      %p52 = scmp.ne.s32.totalorder %s41, %s44
      %p53 = scmp.eq.s32.totalorder %s17, 1
      %p54 = por %p52, %p53
      %p55 = scmp.ne.s32.totalorder %s44, %s45
      %p56 = scmp.eq.s32.totalorder %s17, 0
      %p57 = por %p55, %p56
      %p58 = scmp.ne.s32.totalorder %s44, %s45
      %p59 = scmp.eq.s32.totalorder %s18, 1
      %p60 = por %p58, %p59
      %p62 = scmp.ne.s32.totalorder %s45, %s61
      %p63 = scmp.eq.s32.totalorder %s18, 0
      %p64 = por %p62, %p63
      %s66 = sadd.s32 %s65, 1
      %p69 = scmp.eq.s32.totalorder %s12, 1
      %p70 = scmp.ne.s32.totalorder %s65, %s67
      %p71 = scmp.eq.s32.totalorder %s12, 0
      %p72 = por %p70, %p71
      %p73 = scmp.ne.s32.totalorder %s65, %s67
      %p74 = scmp.eq.s32.totalorder %s17, 1
      %p75 = por %p73, %p74
      %p76 = scmp.ne.s32.totalorder %s67, %s68
      %p77 = scmp.eq.s32.totalorder %s17, 0
      %p78 = por %p76, %p77
      %p79 = scmp.ne.s32.totalorder %s67, %s68
      %p80 = scmp.eq.s32.totalorder %s18, 1
      %p81 = por %p79, %p80
      %p83 = scmp.ne.s32.totalorder %s68, %s82
      %p84 = scmp.eq.s32.totalorder %s18, 0
      %p85 = por %p83, %p84
      %s87 = sadd.s32 %s86, 1
      %p90 = scmp.eq.s32.totalorder %s12, 1
      %p91 = scmp.ne.s32.totalorder %s86, %s88
      %p92 = scmp.eq.s32.totalorder %s12, 0
      %p93 = por %p91, %p92
      %p94 = scmp.ne.s32.totalorder %s86, %s88
      %p95 = scmp.eq.s32.totalorder %s17, 1
      %p96 = por %p94, %p95
      %p97 = scmp.ne.s32.totalorder %s88, %s89
      %p98 = scmp.eq.s32.totalorder %s17, 0
      %p99 = por %p97, %p98
      %p100 = scmp.ne.s32.totalorder %s88, %s89
      %p101 = scmp.eq.s32.totalorder %s18, 1
      %p102 = por %p100, %p101
      %p104 = scmp.ne.s32.totalorder %s89, %s103
      %p105 = scmp.eq.s32.totalorder %s18, 0
      %p106 = por %p104, %p105
      %s107 = ssub.s32 %s19, %s38
      %s108 = ssub.s32 %s20, %s34
      %s109 = sor.u32 %s107, %s108
      %p110 = scmp.eq.s32.totalorder %s109, 0
      %s112 = sadd.s32 %s111, 1
      %s113 = scalar_select %p110, %s111, %s112
      %p116 = pneg %p110
      %p117 = scmp.eq.s32.totalorder %s12, 1
      %p118 = por %p116, %p117
      %p119 = scmp.ne.s32.totalorder %s111, %s114
      %p120 = scmp.eq.s32.totalorder %s12, 0
      %p121 = por %p119, %p120
      %p122 = scmp.ne.s32.totalorder %s111, %s114
      %p123 = scmp.eq.s32.totalorder %s17, 1
      %p124 = por %p122, %p123
      %p125 = scmp.ne.s32.totalorder %s114, %s115
      %p126 = scmp.eq.s32.totalorder %s17, 0
      %p127 = por %p125, %p126
      %p128 = scmp.ne.s32.totalorder %s114, %s115
      %p129 = scmp.eq.s32.totalorder %s18, 1
      %p130 = por %p128, %p129
      %p132 = scmp.ne.s32.totalorder %s115, %s131
      %p133 = scmp.eq.s32.totalorder %s18, 0
      %p134 = por %p132, %p133
      %p135 = scmp.le.s32.totalorder 1, %s12
      %p136 = scmp.lt.s32.totalorder %s12, 3
      %p137 = pnand %p135, %p136
      %p138 = pneg %p137
      // Predicated region
      $region9: #{tpu_custom_call.1} parent=5 // pred_check
        _
      $region10: #{tpu_custom_call.1} parent=5 // pred_check_branch
        %140 = sbr.rel (%p137) target = $region12
      $region11: #{tpu_custom_call.1} parent=5 // pred_region
        %s141 = ssub.s32 %s12, 1
        // Predicated region
        $region13: #{tpu_custom_call.1} parent=11 // pred_check
          %p142 = pneg %p78
        $region14: #{tpu_custom_call.1} parent=11 // pred_check_branch
          %144 = sbr.rel (%p142) target = $region16
        $region15: #{tpu_custom_call.1} parent=11 // pred_region
          _
        $region16: #{tpu_custom_call.1} parent=11 // pred_fallthru
          _
        // Predicated region
        $region17: #{tpu_custom_call.1} parent=11 // pred_check
          %p145 = pneg %p99
        $region18: #{tpu_custom_call.1} parent=11 // pred_check_branch
          %147 = sbr.rel (%p145) target = $region20
        $region19: #{tpu_custom_call.1} parent=11 // pred_region
          _
        $region20: #{tpu_custom_call.1} parent=11 // pred_fallthru
          _
      $region12: #{tpu_custom_call.1} parent=5 // pred_fallthru
        _
      %p148 = scmp.lt.s32.totalorder %s12, 2
      // Predicated region
      $region21: #{tpu_custom_call.1} parent=5 // pred_check
        %p149 = pneg %p148
      $region22: #{tpu_custom_call.1} parent=5 // pred_check_branch
        %151 = sbr.rel (%p149) target = $region24
      $region23: #{tpu_custom_call.1} parent=5 // pred_region
        // Predicated region
        $region25: #{tpu_custom_call.1} parent=23 // pred_check
          %p152 = pneg %p51
        $region26: #{tpu_custom_call.1} parent=23 // pred_check_branch
          %154 = sbr.rel (%p152) target = $region28
        $region27: #{tpu_custom_call.1} parent=23 // pred_region
          %p155 = scmp.lt.s32.totalorder %s20, 1
          %s156 = scalar_select %p155, %s20, 1
          %s157 = smul.addr %s156, 4
          %s158 = scalar_lea.vmem %s0, %s157
        $region28: #{tpu_custom_call.1} parent=23 // pred_fallthru
          _
      $region24: #{tpu_custom_call.1} parent=5 // pred_fallthru
        _
      %p159 = scmp.le.s32.totalorder 1, %s12
      %p160 = scmp.lt.s32.totalorder %s12, 3
      %p161 = pnand %p159, %p160
      %p162 = pneg %p161
      // Predicated region
      $region29: #{tpu_custom_call.1} parent=5 // pred_check
        _
      $region30: #{tpu_custom_call.1} parent=5 // pred_check_branch
        %164 = sbr.rel (%p161) target = $region32
      $region31: #{tpu_custom_call.1} parent=5 // pred_region
        %s165 = ssub.s32 %s12, 1
        %p166 = scmp.lt.s32.totalorder %s23, 1
        %s167 = scalar_select %p166, %s23, 1
        %s168 = smul.addr %s167, 4
        %s169 = scalar_lea.vmem %s0, %s168
        %p170 = pneg %p57
        %p171 = pneg %p54
        %p172 = pneg %p78
        %p173 = pneg %p75
        %p174 = pneg %p99
        %p175 = pneg %p96
        %p176 = pneg %p127
        %p177 = pneg %p124
        %s178 = sand.u32 %s114, 1
        %s179 = scalar_lea.sflag [#allocation6], %s178
        %s180 = sand.u32 %s114, 1
        %s181 = smul.addr %s180, 8
        %s182 = scalar_lea.vmem [#allocation5], %s181
        %p183 = scmp.lt.s32.totalorder %s23, 1
        %s184 = scalar_select %p183, %s23, 1
        %s185 = smul.addr %s184, 4
        %s186 = scalar_lea.vmem %s0, %s185
        %p187 = scmp.eq.s32.totalorder %s24, 0
        // Predicated region
        $region33: #{tpu_custom_call.1} parent=31 // pred_check
          %p188 = pneg %p187
        $region34: #{tpu_custom_call.1} parent=31 // pred_check_branch
          %190 = sbr.rel (%p188) target = $region36
        $region35: #{tpu_custom_call.1} parent=31 // pred_region
          %v191 = vld [vmem:[%s186] sm:$0xf]
          %v192 = vld [vmem:[%s1] sm:$0xff]
          %v193 = vld [vmem:[%s1 + $0x8] sm:$0xff]
          %v194 = vld [vmem:[%s1 + $0x10] sm:$0xff]
          %v195 = vld [vmem:[%s2] sm:$0xff]
          %v196 = vld [vmem:[%s2 + $0x8] sm:$0xff]
          %v197 = vld [vmem:[%s2 + $0x10] sm:$0xff]
          %199 = vset.pattern.permute.xlu0 0
          %200 = vperm.xlu0 %199, %v195
          %v201 = vpop.permute.xlu0 %200
          %204 = vset.pattern.permute.xlu0 0
          %205 = vperm.xlu0 %204, %v196
          %v206 = vpop.permute.xlu0 %205
          %209 = vset.pattern.permute.xlu0 0
          %210 = vperm.xlu0 %209, %v197
          %v211 = vpop.permute.xlu0 %210
          %vm213 = vcmask 31744
          %v215 = vsel %vm213, %v192, 0
          %v218 = vsel %vm213, %v193, 0
          %v221 = vsel %vm213, %v194, 0
          %vm223 = vcmask 1043456
          %v225 = vsel %vm223, %v191, 0
          %227 = vmatpush.msra.mxu0 0.0
          %228 = vmatpush.msra.mxu0 0.0
          %229 = vmatpush.msra.mxu0 0.0
          %230 = vmatpush.msra.mxu0 0.0
          %231 = vmatpush.msra.mxu0 0.0
          %232 = vmatpush.msra.mxu0 0.0
          %233 = vmatpush.msra.mxu0 0.0
          %234 = vmatpush.msra.mxu0 0.0
          %235 = vmatpush.msra.mxu0 0.0
          %236 = vmatpush.msra.mxu0 0.0
          %237 = vmatpush.msra.mxu0 0.0
          %238 = vmatpush.msra.mxu0 0.0
          %239 = vmatpush.msra.mxu0 0.0
          %240 = vmatpush.msra.mxu0 0.0
          %241 = vmatpush.msra.mxu0 0.0
          %242 = vmatpush.msra.mxu0 %v225
          %243 = vmatmul.f32.gmra.mxu0 %v215
          %v244 = vpop.f32.mrf.mxu0
          %v245 = vadd.f32 %v201, %v244
          %246 = vmatmul.f32.gmra.mxu0 %v218
          %v247 = vpop.f32.mrf.mxu0
          %v248 = vadd.f32 %v206, %v247
          %249 = vmatmul.f32.gmra.mxu0 %v221
          %v250 = vpop.f32.mrf.mxu0
          %v251 = vadd.f32 %v211, %v250
          %252 = vdwg.mxu0
          %v253 = vlaneseq
          %v254 = vand.u32 %v253, 127
          %vm255 = vcmp.lt.s32.totalorder %v254, 16
          %v256 = vsel %vm255, 1, 0
          %v257 = vcvt.s32.f32 %v256
          %v258 = vsel %vm255, 0.0, -1e+30
          %v259 = vmul.f32 %v245, %v257
          %260 = vadd.xlane.f32.xlu0 %v259
          %v261 = vpop.xlane.xlu0 %260
          %v262 = vmul.f32 %v261, 0.0625
          %v263 = vsub.f32 %v245, %v262
          %v264 = vmul.f32 %v263, %v257
          %v265 = vmul.f32 %v264, %v264
          %266 = vadd.xlane.f32.xlu0 %v265
          %v267 = vpop.xlane.xlu0 %266
          %v268 = vmul.f32 %v267, 0.0625
          %v269 = vadd.f32 %v268, 1e-05
          %v270 = vrsqrt.pop %v269
          %v271 = vmul.f32 %v270, %v269
          %v272 = vmul.f32 %v271, %v270
          %v273 = vmul.f32 0.5, %v272
          %v274 = vsub.f32 1.5, %v273
          %v275 = vmul.f32 %v270, %v274
          %vm276 = vweird.f32 %v269
          %vm277 = vweird.f32 %v270
          %vm278 = vmor %vm276, %vm277
          %v279 = vsel %vm278, %v270, %v275
          %v280 = vmul.f32 %v263, %v279
          %v281 = vmul.f32 %v248, %v257
          %282 = vadd.xlane.f32.xlu0 %v281
          %v283 = vpop.xlane.xlu0 %282
          %v284 = vmul.f32 %v283, 0.0625
          %v285 = vsub.f32 %v248, %v284
          %v286 = vmul.f32 %v285, %v257
          %v287 = vmul.f32 %v286, %v286
          %288 = vadd.xlane.f32.xlu0 %v287
          %v289 = vpop.xlane.xlu0 %288
          %v290 = vmul.f32 %v289, 0.0625
          %v291 = vadd.f32 %v290, 1e-05
          %v292 = vrsqrt.pop %v291
          %v293 = vmul.f32 %v292, %v291
          %v294 = vmul.f32 %v293, %v292
          %v295 = vmul.f32 0.5, %v294
          %v296 = vsub.f32 1.5, %v295
          %v297 = vmul.f32 %v292, %v296
          %vm298 = vweird.f32 %v291
          %vm299 = vweird.f32 %v292
          %vm300 = vmor %vm298, %vm299
          %v301 = vsel %vm300, %v292, %v297
          %v302 = vmul.f32 %v285, %v301
          %v303 = vmul.f32 %v302, 0.35355338
          %v304 = vmul.f32 %v251, %v257
          %305 = vst [vmem:[#allocation2] sm:$0xff] %v280
          %306 = vst [vmem:[#allocation2 + $0x8] sm:$0x1] %v258
          %307 = vst [vmem:[#allocation3] sm:$0xff] %v303
          %308 = vst [vmem:[#allocation3 + $0x8] sm:$0x1] 1.0
          %309 = vst [vmem:[#allocation4] sm:$0xff] %v304
        $region36: #{tpu_custom_call.1} parent=31 // pred_fallthru
          _
        %s310 = sadd.s32 %s22, %s24
        %s311 = smul.u32 %s310, 128
        %s312 = sshra.s32 %s311, 7
        %s313 = sand.u32 %s311, 127
        %s314 = scalar_lea.vmem [#allocation3], %s312
        %v315 = vld [vmem:[%s314] sm:$0xff]
        %v316 = vld [vmem:[%s314 + $0x8] sm:$0x1]
        %v317 = vld [vmem:[#allocation2] sm:$0xff]
        %v318 = vld [vmem:[#allocation2 + $0x8] sm:$0x1]
        %319 = vxpose.xlu0.b32.start [1/16] %v317, 128
        %320 = vxpose.xlu0.b32.cont [2/16] %v318, 128
        %321 = vxpose.xlu0.b32.cont [3/16] 0.0, 128
        %322 = vxpose.xlu0.b32.cont [4/16] 0.0, 128
        %323 = vxpose.xlu0.b32.cont [5/16] 0.0, 128
        %324 = vxpose.xlu0.b32.cont [6/16] 0.0, 128
        %325 = vxpose.xlu0.b32.cont [7/16] 0.0, 128
        %326 = vxpose.xlu0.b32.cont [8/16] 0.0, 128
        %327 = vxpose.xlu0.b32.cont [9/16] 0.0, 128
        %328 = vxpose.xlu0.b32.cont [10/16] 0.0, 128
        %329 = vxpose.xlu0.b32.cont [11/16] 0.0, 128
        %330 = vxpose.xlu0.b32.cont [12/16] 0.0, 128
        %331 = vxpose.xlu0.b32.cont [13/16] 0.0, 128
        %332 = vxpose.xlu0.b32.cont [14/16] 0.0, 128
        %333 = vxpose.xlu0.b32.cont [15/16] 0.0, 128
        %334 = vxpose.xlu0.b32.end [16/16] 0.0, 128
        %v335 = vpop.trf.xlu0
        %v336 = vpop.trf.xlu0
        %v337 = vpop.trf.xlu0
        %v338 = vpop.trf.xlu0
        %v339 = vpop.trf.xlu0
        %v340 = vpop.trf.xlu0
        %v341 = vpop.trf.xlu0
        %v342 = vpop.trf.xlu0
        %v343 = vpop.trf.xlu0
        %v344 = vpop.trf.xlu0
        %v345 = vpop.trf.xlu0
        %v346 = vpop.trf.xlu0
        %v347 = vpop.trf.xlu0
        %v348 = vpop.trf.xlu0
        %v349 = vpop.trf.xlu0
        %v350 = vpop.trf.xlu0
        %vm351 = vcmask 72704
        %v353 = vsel %vm351, %v335, 0
        %v356 = vsel %vm351, %v336, 0
        %v359 = vsel %vm351, %v337, 0
        %v362 = vsel %vm351, %v338, 0
        %v365 = vsel %vm351, %v339, 0
        %v368 = vsel %vm351, %v340, 0
        %v371 = vsel %vm351, %v341, 0
        %v374 = vsel %vm351, %v342, 0
        %v377 = vsel %vm351, %v343, 0
        %v380 = vsel %vm351, %v344, 0
        %v383 = vsel %vm351, %v345, 0
        %v386 = vsel %vm351, %v346, 0
        %v389 = vsel %vm351, %v347, 0
        %v392 = vsel %vm351, %v348, 0
        %v395 = vsel %vm351, %v349, 0
        %v398 = vsel %vm351, %v350, 0
        %vm400 = vcmask 1040384
        %v402 = vsel %vm400, %v316, 0
        %404 = vmatpush.msra.mxu0 0.0
        %405 = vmatpush.msra.mxu0 0.0
        %406 = vmatpush.msra.mxu0 0.0
        %407 = vmatpush.msra.mxu0 0.0
        %408 = vmatpush.msra.mxu0 0.0
        %409 = vmatpush.msra.mxu0 0.0
        %410 = vmatpush.msra.mxu0 0.0
        %411 = vmatpush.msra.mxu0 0.0
        %412 = vmatpush.msra.mxu0 0.0
        %413 = vmatpush.msra.mxu0 0.0
        %414 = vmatpush.msra.mxu0 0.0
        %415 = vmatpush.msra.mxu0 0.0
        %416 = vmatpush.msra.mxu0 0.0
        %417 = vmatpush.msra.mxu0 0.0
        %418 = vmatpush.msra.mxu0 %v402
        %419 = vmatpush.msra.mxu0 %v315
        %420 = vmatmul.f32.gmra.mxu0 %v353
        %v421 = vpop.f32.mrf.mxu0
        %v422 = vadd.f32 0.0, %v421
        %423 = vmatmul.f32.gmra.mxu0 %v356
        %v424 = vpop.f32.mrf.mxu0
        %v425 = vadd.f32 0.0, %v424
        %426 = vmatmul.f32.gmra.mxu0 %v359
        %v427 = vpop.f32.mrf.mxu0
        %v428 = vadd.f32 0.0, %v427
        %429 = vmatmul.f32.gmra.mxu0 %v362
        %v430 = vpop.f32.mrf.mxu0
        %v431 = vadd.f32 0.0, %v430
        %432 = vmatmul.f32.gmra.mxu0 %v365
        %v433 = vpop.f32.mrf.mxu0
        %v434 = vadd.f32 0.0, %v433
        %435 = vmatmul.f32.gmra.mxu0 %v368
        %v436 = vpop.f32.mrf.mxu0
        %v437 = vadd.f32 0.0, %v436
        %438 = vmatmul.f32.gmra.mxu0 %v371
        %v439 = vpop.f32.mrf.mxu0
        %v440 = vadd.f32 0.0, %v439
        %441 = vmatmul.f32.gmra.mxu0 %v374
        %v442 = vpop.f32.mrf.mxu0
        %v443 = vadd.f32 0.0, %v442
        %444 = vmatmul.f32.gmra.mxu0 %v377
        %v445 = vpop.f32.mrf.mxu0
        %v446 = vadd.f32 0.0, %v445
        %447 = vmatmul.f32.gmra.mxu0 %v380
        %v448 = vpop.f32.mrf.mxu0
        %v449 = vadd.f32 0.0, %v448
        %450 = vmatmul.f32.gmra.mxu0 %v383
        %v451 = vpop.f32.mrf.mxu0
        %v452 = vadd.f32 0.0, %v451
        %453 = vmatmul.f32.gmra.mxu0 %v386
        %v454 = vpop.f32.mrf.mxu0
        %v455 = vadd.f32 0.0, %v454
        %456 = vmatmul.f32.gmra.mxu0 %v389
        %v457 = vpop.f32.mrf.mxu0
        %v458 = vadd.f32 0.0, %v457
        %459 = vmatmul.f32.gmra.mxu0 %v392
        %v460 = vpop.f32.mrf.mxu0
        %v461 = vadd.f32 0.0, %v460
        %462 = vmatmul.f32.gmra.mxu0 %v395
        %v463 = vpop.f32.mrf.mxu0
        %v464 = vadd.f32 0.0, %v463
        %465 = vmatmul.f32.gmra.mxu0 %v398
        %v466 = vpop.f32.mrf.mxu0
        %v467 = vadd.f32 0.0, %v466
        %468 = vdwg.mxu0
        %v469 = vmax.f32 %v422, %v434
        %v470 = vmax.f32 %v425, %v437
        %v471 = vmax.f32 %v428, %v440
        %v472 = vmax.f32 %v431, %v443
        %v473 = vmax.f32 %v469, %v446
        %v474 = vmax.f32 %v470, %v449
        %v475 = vmax.f32 %v471, %v452
        %v476 = vmax.f32 %v472, %v455
        %v477 = vmax.f32 %v473, %v458
        %v478 = vmax.f32 %v474, %v461
        %v479 = vmax.f32 %v475, %v464
        %v480 = vmax.f32 %v476, %v467
        %v481 = vmax.f32 %v477, %v478
        %v482 = vmax.f32 %v479, %v480
        %v483 = vmax.f32 %v481, %v482
        %v484 = vrot.slane %v483, 4
        %v485 = vmax.f32 %v483, %v484
        %v486 = vrot.slane %v485, 2
        %v487 = vmax.f32 %v485, %v486
        %v488 = vrot.slane %v487, 1
        %v489 = vmax.f32 %v487, %v488
        %v490 = vsub.f32 %v422, %v489
        %v491 = vsub.f32 %v425, %v489
        %v492 = vsub.f32 %v428, %v489
        %v493 = vsub.f32 %v431, %v489
        %v494 = vsub.f32 %v434, %v489
        %v495 = vsub.f32 %v437, %v489
        %v496 = vsub.f32 %v440, %v489
        %v497 = vsub.f32 %v443, %v489
        %v498 = vsub.f32 %v446, %v489
        %v499 = vsub.f32 %v449, %v489
        %v500 = vsub.f32 %v452, %v489
        %v501 = vsub.f32 %v455, %v489
        %v502 = vsub.f32 %v458, %v489
        %v503 = vsub.f32 %v461, %v489
        %v504 = vsub.f32 %v464, %v489
        %v505 = vsub.f32 %v467, %v489
        %v506 = vmul.f32 %v490, 1.442695
        %v507 = vpow.pop %v506
        %v508 = vmul.f32 %v491, 1.442695
        %v509 = vpow.pop %v508
        %v510 = vmul.f32 %v492, 1.442695
        %v511 = vpow.pop %v510
        %v512 = vmul.f32 %v493, 1.442695
        %v513 = vpow.pop %v512
        %v514 = vmul.f32 %v494, 1.442695
        %v515 = vpow.pop %v514
        %v516 = vmul.f32 %v495, 1.442695
        %v517 = vpow.pop %v516
        %v518 = vmul.f32 %v496, 1.442695
        %v519 = vpow.pop %v518
        %v520 = vmul.f32 %v497, 1.442695
        %v521 = vpow.pop %v520
        %v522 = vmul.f32 %v498, 1.442695
        %v523 = vpow.pop %v522
        %v524 = vmul.f32 %v499, 1.442695
        %v525 = vpow.pop %v524
        %v526 = vmul.f32 %v500, 1.442695
        %v527 = vpow.pop %v526
        %v528 = vmul.f32 %v501, 1.442695
        %v529 = vpow.pop %v528
        %v530 = vmul.f32 %v502, 1.442695
        %v531 = vpow.pop %v530
        %v532 = vmul.f32 %v503, 1.442695
        %v533 = vpow.pop %v532
        %v534 = vmul.f32 %v504, 1.442695
        %v535 = vpow.pop %v534
        %v536 = vmul.f32 %v505, 1.442695
        %v537 = vpow.pop %v536
        %v538 = vadd.f32 %v507, %v509
        %v539 = vadd.f32 %v538, %v511
        %v540 = vadd.f32 %v539, %v513
        %v541 = vadd.f32 %v540, %v515
        %v542 = vadd.f32 %v541, %v517
        %v543 = vadd.f32 %v542, %v519
        %v544 = vadd.f32 %v543, %v521
        %v545 = vadd.f32 %v544, %v523
        %v546 = vadd.f32 %v545, %v525
        %v547 = vadd.f32 %v546, %v527
        %v548 = vadd.f32 %v547, %v529
        %v549 = vadd.f32 %v548, %v531
        %v550 = vadd.f32 %v549, %v533
        %v551 = vadd.f32 %v550, %v535
        %v552 = vadd.f32 %v551, %v537
        %v553 = vrot.slane %v552, 4
        %v554 = vadd.f32 %v552, %v553
        %v555 = vrot.slane %v554, 2
        %v556 = vadd.f32 %v554, %v555
        %v557 = vrot.slane %v556, 1
        %v558 = vadd.f32 %v556, %v557
        %v559 = vrcp.pop %v558
        %v560 = vmul.f32 %v558, %v559
        %v561 = vsub.f32 1.0, %v560
        %v562 = vmul.f32 %v559, %v561
        %v563 = vadd.f32 %v559, %v562
        %vm564 = vweird.f32 %v558
        %vm565 = vweird.f32 %v559
        %vm566 = vmor %vm564, %vm565
        %v567 = vsel %vm566, %v559, %v563
        %v568 = vand.u32 2147483647, %v558
        %vm569 = vcmp.eq.f32.partialorder %v568, 8.507059e+37
        %v570 = vand.u32 %v558, 2147483648
        %v571 = vor.u32 1.1754944e-38, %v570
        %v572 = vsel %vm569, %v571, %v567
        %s573 = scalar_lea.vmem [#allocation4], %s312
        %v574 = vld [vmem:[%s573] sm:$0xff]
        %v575 = vmul.f32 %v574, %v572
        %576 = vmatpush.xpose.msra.mxu0 %v537
        %577 = vmatpush.xpose.msra.mxu0 %v535
        %578 = vmatpush.xpose.msra.mxu0 %v533
        %579 = vmatpush.xpose.msra.mxu0 %v531
        %580 = vmatpush.xpose.msra.mxu0 %v529
        %581 = vmatpush.xpose.msra.mxu0 %v527
        %582 = vmatpush.xpose.msra.mxu0 %v525
        %583 = vmatpush.xpose.msra.mxu0 %v523
        %584 = vmatpush.xpose.msra.mxu0 %v521
        %585 = vmatpush.xpose.msra.mxu0 %v519
        %586 = vmatpush.xpose.msra.mxu0 %v517
        %587 = vmatpush.xpose.msra.mxu0 %v515
        %588 = vmatpush.xpose.msra.mxu0 %v513
        %589 = vmatpush.xpose.msra.mxu0 %v511
        %590 = vmatpush.xpose.msra.mxu0 %v509
        %591 = vmatpush.xpose.msra.mxu0 %v507
        %592 = vmatmul.f32.gmra.mxu0 %v575
        %v593 = vpop.f32.mrf.mxu0
        %v594 = vadd.f32 0.0, %v593
        %595 = vdwg.mxu0
        // Predicated region
        $region37: #{tpu_custom_call.1} parent=31 // pred_check
          %p596 = pneg %p187
        $region38: #{tpu_custom_call.1} parent=31 // pred_check_branch
          %598 = sbr.rel (%p596) target = $region40
        $region39: #{tpu_custom_call.1} parent=31 // pred_region
          %599 = vst [vmem:[%s182] sm:$0xff] %v594
        $region40: #{tpu_custom_call.1} parent=31 // pred_fallthru
          _
        %p600 = scmp.gt.s32.totalorder %s24, 0
        // Predicated region
        $region41: #{tpu_custom_call.1} parent=31 // pred_check
          %p601 = pneg %p600
        $region42: #{tpu_custom_call.1} parent=31 // pred_check_branch
          %603 = sbr.rel (%p601) target = $region44
        $region43: #{tpu_custom_call.1} parent=31 // pred_region
          %v604 = vld [vmem:[%s182] sm:$0xff]
          %v605 = vadd.f32 %v604, %v594
          %606 = vst [vmem:[%s182] sm:$0xff] %v605
        $region44: #{tpu_custom_call.1} parent=31 // pred_fallthru
          _
        %s607 = sand.u32 %s114, 1
        %s608 = scalar_lea.sflag [#allocation6], %s607
        %s609 = sand.u32 %s114, 1
        %s610 = smul.addr %s609, 8
        %s611 = scalar_lea.vmem [#allocation5], %s610
        // Predicated region
        $region45: #{tpu_custom_call.1} parent=31 // pred_check
          %p612 = pneg %p124
        $region46: #{tpu_custom_call.1} parent=31 // pred_check_branch
          %614 = sbr.rel (%p612) target = $region48
        $region47: #{tpu_custom_call.1} parent=31 // pred_region
          %616 = vsyncadd %s608, 0
          %s617 = smul.addr %s22, 2
          %s618 = sadd.s32 %s23, %s617
          %s619 = smul.addr %s618, 8
          %s620 = scalar_lea.hbm %s3, %s619
          %s622 = sshll.u32 %s611, 4
          %s623 = int_to_ptr.vmem [resolvable:$true] %s622
          %s624 = sshll.u32 %s620, 4
          %s625 = int_to_ptr.hbm [resolvable:$true] %s624
          %627 = dma.vmem_to_hbm [thread:$0]  %s623, 128, %s625, %s608
        $region48: #{tpu_custom_call.1} parent=31 // pred_fallthru
          _
      $region32: #{tpu_custom_call.1} parent=5 // pred_fallthru
        _
      %p628 = scmp.le.s32.totalorder 2, %s12
      // Predicated region
      $region49: #{tpu_custom_call.1} parent=5 // pred_check
        %p629 = pneg %p628
      $region50: #{tpu_custom_call.1} parent=5 // pred_check_branch
        %631 = sbr.rel (%p629) target = $region52
      $region51: #{tpu_custom_call.1} parent=5 // pred_region
        %s632 = ssub.s32 %s12, 2
        // Predicated region
        $region53: #{tpu_custom_call.1} parent=51 // pred_check
          %p633 = pneg %p130
        $region54: #{tpu_custom_call.1} parent=51 // pred_check_branch
          %635 = sbr.rel (%p633) target = $region56
        $region55: #{tpu_custom_call.1} parent=51 // pred_region
          %s636 = sand.u32 %s115, 1
          %s637 = scalar_lea.sflag [#allocation6], %s636
          %s638 = sand.u32 %s115, 1
          %s639 = smul.addr %s638, 8
          %s640 = scalar_lea.vmem [#allocation5], %s639
          %642 = dma.done %s637, 128
        $region56: #{tpu_custom_call.1} parent=51 // pred_fallthru
          _
      $region52: #{tpu_custom_call.1} parent=5 // pred_fallthru
        _
    $region6: #{tpu_custom_call.1} parent=1 // loop_footer
      %s16 = sadd.s32 1, %s12
    $region7: #{tpu_custom_call.1} parent=1 // loop_footer_branch
      %11 = sbr.rel target = $region3
    $region8: #{tpu_custom_call.1} parent=1 // loop_exit
      _
    %643 = vsyncpa [#allocation6], 1
    %s644 = scalar_lea.sflag [#allocation6], 1
    %645 = vsyncpa %s644, 1

</llo_original>
